<compile_context>
chip_gen: v6e
topology: v6e:2x2x1
jax: 0.10.0
libtpu: 0.0.40
codegen_flags: <defaults>
</compile_context>

<pallas_src>
import functools

import jax
import jax.numpy as jnp
from jax import lax
from jax.experimental import pallas as pl
from jax.experimental.pallas import tpu as pltpu

EPS = 1e-5  # nn.BatchNorm2d default eps


def _round_up(x, m):
    return (x + m - 1) // m * m


# ----------------------------- Pallas kernel --------------------------------

def _center_block_kernel(a1t_ref, w1_ref, w2_ref, o_ref, *, m_true, bf16_matmul):
    """Whole CenterBlock forward on one VMEM-resident tile.

    a1t_ref : (Kp, Mp)   transposed 3x3/stride-2 patches (zero-padded)
    w1_ref  : (mid, Kp)  conv3x3 weights, (tap, cin) flattened on the lane axis
    w2_ref  : (out, mid) conv1x1 weights
    o_ref   : (out, Mp)  normalized + ReLU'd output, channels x flat spatial
    """
    mp = a1t_ref.shape[-1]

    if bf16_matmul:
        cast = lambda t: t.astype(jnp.bfloat16)
    else:
        cast = lambda t: t

    # Lane mask for BN statistics when M was padded up to a multiple of 128.
    if m_true != mp:
        lane = lax.broadcasted_iota(jnp.int32, (1, mp), 1)
        valid = (lane < m_true).astype(jnp.float32)
    else:
        valid = None

    def bn_relu(y):
        # Training-mode BatchNorm (gamma=1, beta=0), centered two-pass variance.
        ys = y if valid is None else y * valid
        mean = jnp.sum(ys, axis=-1, keepdims=True) * (1.0 / m_true)
        yc = y - mean
        sq = yc * yc if valid is None else (yc * yc) * valid
        var = jnp.sum(sq, axis=-1, keepdims=True) * (1.0 / m_true)
        return jnp.maximum(yc * lax.rsqrt(var + EPS), 0.0)

    # Stage 1: Conv2d(in, mid, 3, stride=2, pad=1, bias=False) as W1 @ A^T.
    y1 = jnp.dot(cast(w1_ref[...]), cast(a1t_ref[...]),
                 preferred_element_type=jnp.float32)          # (mid, Mp)
    y1 = bn_relu(y1)

    # Stage 2: Conv2d(mid, out, 1, bias=False) as W2 @ Y1.
    y2 = jnp.dot(cast(w2_ref[...]), cast(y1),
                 preferred_element_type=jnp.float32)          # (out, Mp)
    o_ref[...] = bn_relu(y2)


# ----------------------------- host-side wrapper -----------------------------

def _patches_T(x_nhwc, k, stride, pad):
    """Transposed im2col: A^T of shape (k*k*C, N*Ho*Wo).

    Cheap layout plumbing feeding the single fused kernel (tens of KB here).
    """
    n, h, w, c = x_nhwc.shape
    ho = (h + 2 * pad - k) // stride + 1
    wo = (w + 2 * pad - k) // stride + 1
    xp = jnp.pad(x_nhwc, ((0, 0), (pad, pad), (pad, pad), (0, 0)))
    taps = []
    for di in range(k):
        for dj in range(k):
            taps.append(xp[:, di:di + stride * (ho - 1) + 1:stride,
                           dj:dj + stride * (wo - 1) + 1:stride, :])
    p = jnp.stack(taps, axis=0)               # (k*k, N, Ho, Wo, C)
    p = jnp.transpose(p, (0, 4, 1, 2, 3))     # (k*k, C, N, Ho, Wo)
    return p.reshape(k * k * c, n * ho * wo), (n, ho, wo)


def center_block_forward(x_nchw, params, *, bf16_matmul=False):
    """CenterBlock.forward: ConvReLU(3x3, s=2, p=1) -> ConvReLU(1x1)."""
    w1 = params["conv3x3_w"]                  # (mid, in, 3, 3)
    w2 = params["conv1x1_w"]                  # (out, mid, 1, 1)
    mid, cin = w1.shape[0], w1.shape[1]
    outc = w2.shape[0]

    x = jnp.transpose(x_nchw, (0, 2, 3, 1)).astype(jnp.float32)   # NCHW -> NHWC
    a1t, (n, ho, wo) = _patches_T(x, k=3, stride=2, pad=1)
    kdim, m = a1t.shape

    # Pad contraction dim K and flattened-spatial dim M to multiples of 128 so
    # every load/store in the kernel is lane-dense / unmasked.
    kp = _round_up(kdim, 128)
    mp = _round_up(m, 128)
    a1t = jnp.pad(a1t, ((0, kp - kdim), (0, mp - m)))
    w1m = jnp.transpose(w1, (0, 2, 3, 1)).reshape(mid, kdim)      # (mid, 9*cin)
    w1m = jnp.pad(w1m, ((0, 0), (0, kp - kdim)))
    w2m = w2.reshape(outc, mid)

    y = pl.pallas_call(
        functools.partial(_center_block_kernel, m_true=m,
                          bf16_matmul=bf16_matmul),
        out_shape=jax.ShapeDtypeStruct((outc, mp), jnp.float32),
        in_specs=[pl.BlockSpec(memory_space=pltpu.MemorySpace.VMEM)] * 3,
        out_specs=pl.BlockSpec(memory_space=pltpu.MemorySpace.VMEM),
    )(a1t, w1m, w2m)

    y = y[:, :m].reshape(outc, n, ho, wo)
    return jnp.transpose(y, (1, 0, 2, 3))                         # -> NCHW


# ----------------------------- pure-JAX reference ----------------------------

def _ref_bn_train(y_nchw, relu):
    mean = jnp.mean(y_nchw, axis=(0, 2, 3), keepdims=True)
    var = jnp.mean((y_nchw - mean) ** 2, axis=(0, 2, 3), keepdims=True)
    y = (y_nchw - mean) * lax.rsqrt(var + EPS)
    return jnp.maximum(y, 0.0) if relu else y


def center_block_reference(x, params):
    dn = ("NCHW", "OIHW", "NCHW")
    y = lax.conv_general_dilated(x, params["conv3x3_w"], (2, 2), ((1, 1), (1, 1)),
                                 dimension_numbers=dn)
    y = _ref_bn_train(y, relu=True)
    y = lax.conv_general_dilated(y, params["conv1x1_w"], (1, 1), ((0, 0), (0, 0)),
                                 dimension_numbers=dn)
    return _ref_bn_train(y, relu=True)


# ----------------------------- main ------------------------------------------

if __name__ == "__main__":
    in_c, mid_c, out_c = 4, 8, 8
    n, h, w = 2, 16, 16

    key = jax.random.PRNGKey(0)
    kx, k1, k2 = jax.random.split(key, 3)
    params = {
        # kaiming_normal_ (fan_in, gain=sqrt(2)) as in ConvReLU._weight_init
        "conv3x3_w": jax.random.normal(k1, (mid_c, in_c, 3, 3), jnp.float32)
                     * jnp.sqrt(2.0 / (in_c * 9)),
        "conv1x1_w": jax.random.normal(k2, (out_c, mid_c, 1, 1), jnp.float32)
                     * jnp.sqrt(2.0 / mid_c),
    }
    x = jax.random.normal(kx, (n, in_c, h, w), jnp.float32)

    out = jax.jit(center_block_forward)(x, params)
    out = jax.block_until_ready(out)
    assert out.shape == (n, out_c, h // 2, w // 2), out.shape

    ref = center_block_reference(x, params)
    max_err = float(jnp.max(jnp.abs(out - ref)))
    assert jnp.allclose(out, ref, atol=2e-2, rtol=2e-2), max_err

    print("KERNEL_OK")
</pallas_src>

<mosaic_0001>
module attributes {stable_mosaic.version = 11 : i64} {
  func.func @_center_block_kernel(%arg0: memref<128x128xf32, #tpu.memory_space<vmem>>, %arg1: memref<8x128xf32, #tpu.memory_space<vmem>>, %arg2: memref<8x8xf32, #tpu.memory_space<vmem>>, %arg3: memref<8x128xf32, #tpu.memory_space<vmem>>) attributes {dimension_semantics = [], scalar_prefetch = 0 : i64, scratch_operands = 0 : i64, tpu.core_type = #tpu.core_type<tc>} {
    %c0 = arith.constant 0 : index
    %c0_0 = arith.constant 0 : index
    %0 = vector.load %arg1[%c0, %c0_0] : memref<8x128xf32, #tpu.memory_space<vmem>>, vector<8x128xf32>
    %c0_1 = arith.constant 0 : index
    %c0_2 = arith.constant 0 : index
    %1 = vector.load %arg0[%c0_1, %c0_2] : memref<128x128xf32, #tpu.memory_space<vmem>>, vector<128x128xf32>
    %cst = arith.constant dense<0.000000e+00> : vector<8x128xf32>
    %2 = tpu.matmul %0, %1, %cst {dimension_numbers = #tpu.dot_dimension_numbers<[1], [0], [0], [1], [0, 0, 1, 1], [], []>} : vector<8x128xf32>, vector<128x128xf32>, vector<8x128xf32> -> vector<8x128xf32>
    %cst_3 = arith.constant dense<0.000000e+00> : vector<8xf32>
    %3 = vector.multi_reduction <add>, %2, %cst_3 [1] : vector<8x128xf32> to vector<8xf32>
    %4 = vector.shape_cast %3 : vector<8xf32> to vector<8x1xf32>
    %cst_4 = arith.constant 7.812500e-03 : f32
    %5 = vector.broadcast %cst_4 : f32 to vector<8x1xf32>
    %6 = arith.mulf %4, %5 : vector<8x1xf32>
    %7 = vector.broadcast %6 : vector<8x1xf32> to vector<8x128xf32>
    %8 = arith.subf %2, %7 : vector<8x128xf32>
    %9 = arith.mulf %8, %8 : vector<8x128xf32>
    %cst_5 = arith.constant dense<0.000000e+00> : vector<8xf32>
    %10 = vector.multi_reduction <add>, %9, %cst_5 [1] : vector<8x128xf32> to vector<8xf32>
    %11 = vector.shape_cast %10 : vector<8xf32> to vector<8x1xf32>
    %cst_6 = arith.constant 7.812500e-03 : f32
    %12 = vector.broadcast %cst_6 : f32 to vector<8x1xf32>
    %13 = arith.mulf %11, %12 : vector<8x1xf32>
    %cst_7 = arith.constant 9.99999974E-6 : f32
    %14 = vector.broadcast %cst_7 : f32 to vector<8x1xf32>
    %15 = arith.addf %13, %14 : vector<8x1xf32>
    %16 = math.rsqrt %15 : vector<8x1xf32>
    %17 = vector.broadcast %16 : vector<8x1xf32> to vector<8x128xf32>
    %18 = arith.mulf %8, %17 : vector<8x128xf32>
    %cst_8 = arith.constant 0.000000e+00 : f32
    %19 = vector.broadcast %cst_8 : f32 to vector<8x128xf32>
    %20 = arith.maximumf %18, %19 : vector<8x128xf32>
    %c0_9 = arith.constant 0 : index
    %c0_10 = arith.constant 0 : index
    %21 = vector.load %arg2[%c0_9, %c0_10] : memref<8x8xf32, #tpu.memory_space<vmem>>, vector<8x8xf32>
    %cst_11 = arith.constant dense<0.000000e+00> : vector<8x128xf32>
    %22 = tpu.matmul %21, %20, %cst_11 {dimension_numbers = #tpu.dot_dimension_numbers<[1], [0], [0], [1], [0, 0, 1, 1], [], []>} : vector<8x8xf32>, vector<8x128xf32>, vector<8x128xf32> -> vector<8x128xf32>
    %cst_12 = arith.constant dense<0.000000e+00> : vector<8xf32>
    %23 = vector.multi_reduction <add>, %22, %cst_12 [1] : vector<8x128xf32> to vector<8xf32>
    %24 = vector.shape_cast %23 : vector<8xf32> to vector<8x1xf32>
    %cst_13 = arith.constant 7.812500e-03 : f32
    %25 = vector.broadcast %cst_13 : f32 to vector<8x1xf32>
    %26 = arith.mulf %24, %25 : vector<8x1xf32>
    %27 = vector.broadcast %26 : vector<8x1xf32> to vector<8x128xf32>
    %28 = arith.subf %22, %27 : vector<8x128xf32>
    %29 = arith.mulf %28, %28 : vector<8x128xf32>
    %cst_14 = arith.constant dense<0.000000e+00> : vector<8xf32>
    %30 = vector.multi_reduction <add>, %29, %cst_14 [1] : vector<8x128xf32> to vector<8xf32>
    %31 = vector.shape_cast %30 : vector<8xf32> to vector<8x1xf32>
    %cst_15 = arith.constant 7.812500e-03 : f32
    %32 = vector.broadcast %cst_15 : f32 to vector<8x1xf32>
    %33 = arith.mulf %31, %32 : vector<8x1xf32>
    %cst_16 = arith.constant 9.99999974E-6 : f32
    %34 = vector.broadcast %cst_16 : f32 to vector<8x1xf32>
    %35 = arith.addf %33, %34 : vector<8x1xf32>
    %36 = math.rsqrt %35 : vector<8x1xf32>
    %37 = vector.broadcast %36 : vector<8x1xf32> to vector<8x128xf32>
    %38 = arith.mulf %28, %37 : vector<8x128xf32>
    %cst_17 = arith.constant 0.000000e+00 : f32
    %39 = vector.broadcast %cst_17 : f32 to vector<8x128xf32>
    %40 = arith.maximumf %38, %39 : vector<8x128xf32>
    %c0_18 = arith.constant 0 : index
    %c0_19 = arith.constant 0 : index
    %41 = vector.load %arg3[%c0_18, %c0_19] : memref<8x128xf32, #tpu.memory_space<vmem>>, vector<8x128xf32>
    tpu.vector_store %arg3[%c0_18, %c0_19], %40 {strides = array<i32>} : memref<8x128xf32, #tpu.memory_space<vmem>>, vector<8x128xf32>,
    return
  }
}

</mosaic_0001>

<llo_original>
// kernel: center_block_forward.1
$region0: #{center_block_forward.1}
  #allocation0 [shape = 'u32[]', space=smem, size = 0x4, offset = 0x4, fixed_abs, tag = 'smem constant byte address 0x4 - core index']
  #allocation1 [shape = 'u32[144,128]{1,0:T(1,128)}', space=vmem, size = 0x12000, scoped, tag = 'internal scratch']
  %s0 = inlined_call_operand.vmem [shape: f32[128,128], index: 0, kind: input, shape index: {}]
  %s1 = inlined_call_operand.vmem [shape: f32[8,128], index: 1, kind: input, shape index: {}]
  %s2 = inlined_call_operand.vmem [shape: f32[8,8], index: 2, kind: input, shape index: {}]
  %s3 = inlined_call_operand.vmem [shape: f32[8,128], index: 3, kind: output, shape index: {}]
  %s4 = sld [smem:[#allocation0]]
  $region22: #{center_block_forward.1} parent=0
    _
  %s6 = ssub.s32 1, %s4
  %s7 = scalar_select 0, %s6, %s4
  // Predicated region
  $region2: #{center_block_forward.1} parent=0 // pred_check
    _
  $region3: #{center_block_forward.1} parent=0 // pred_check_branch
    %9 = sbr.rel (0) target = $region5
  $region4: #{center_block_forward.1} parent=0 // pred_region
    _
  $region5: #{center_block_forward.1} parent=0 // pred_fallthru
    _
  // Predicated region
  $region6: #{center_block_forward.1} parent=0 // pred_check
    _
  $region7: #{center_block_forward.1} parent=0 // pred_check_branch
    %11 = sbr.rel (0) target = $region9
  $region8: #{center_block_forward.1} parent=0 // pred_region
    _
  $region9: #{center_block_forward.1} parent=0 // pred_fallthru
    _
  // Predicated region
  $region10: #{center_block_forward.1} parent=0 // pred_check
    _
  $region11: #{center_block_forward.1} parent=0 // pred_check_branch
    %13 = sbr.rel (0) target = $region13
  $region12: #{center_block_forward.1} parent=0 // pred_region
    _
  $region13: #{center_block_forward.1} parent=0 // pred_fallthru
    _
  %v14 = vld [vmem:[%s1] sm:$0xff]
  %v15 = vld [vmem:[%s0] sm:$0xff]
  %v16 = vld [vmem:[%s0 + $0x8] sm:$0xff]
  %v17 = vld [vmem:[%s0 + $0x10] sm:$0xff]
  %v18 = vld [vmem:[%s0 + $0x18] sm:$0xff]
  %v19 = vld [vmem:[%s0 + $0x20] sm:$0xff]
  %v20 = vld [vmem:[%s0 + $0x28] sm:$0xff]
  %v21 = vld [vmem:[%s0 + $0x30] sm:$0xff]
  %v22 = vld [vmem:[%s0 + $0x38] sm:$0xff]
  %v23 = vld [vmem:[%s0 + $0x40] sm:$0xff]
  %v24 = vld [vmem:[%s0 + $0x48] sm:$0xff]
  %v25 = vld [vmem:[%s0 + $0x50] sm:$0xff]
  %v26 = vld [vmem:[%s0 + $0x58] sm:$0xff]
  %v27 = vld [vmem:[%s0 + $0x60] sm:$0xff]
  %v28 = vld [vmem:[%s0 + $0x68] sm:$0xff]
  %v29 = vld [vmem:[%s0 + $0x70] sm:$0xff]
  %v30 = vld [vmem:[%s0 + $0x78] sm:$0xff]
  %31 = vmatprep.subr.mxu0 0.0
  %32 = vmatpush1.msra.mxu0 %v30
  %33 = vmatprep.subr.mxu0 0.0
  %34 = vmatpush1.msra.mxu0 %v29
  %35 = vmatprep.subr.mxu0 0.0
  %36 = vmatpush1.msra.mxu0 %v28
  %37 = vmatprep.subr.mxu0 0.0
  %38 = vmatpush1.msra.mxu0 %v27
  %39 = vmatprep.subr.mxu0 0.0
  %40 = vmatpush1.msra.mxu0 %v26
  %41 = vmatprep.subr.mxu0 0.0
  %42 = vmatpush1.msra.mxu0 %v25
  %43 = vmatprep.subr.mxu0 0.0
  %44 = vmatpush1.msra.mxu0 %v24
  %45 = vmatprep.subr.mxu0 0.0
  %46 = vmatpush1.msra.mxu0 %v23
  %47 = vmatprep.subr.mxu0 0.0
  %48 = vmatpush1.msra.mxu0 %v22
  %49 = vmatprep.subr.mxu0 0.0
  %50 = vmatpush1.msra.mxu0 %v21
  %51 = vmatprep.subr.mxu0 0.0
  %52 = vmatpush1.msra.mxu0 %v20
  %53 = vmatprep.subr.mxu0 0.0
  %54 = vmatpush1.msra.mxu0 %v19
  %55 = vmatprep.subr.mxu0 0.0
  %56 = vmatpush1.msra.mxu0 %v18
  %57 = vmatprep.subr.mxu0 0.0
  %58 = vmatpush1.msra.mxu0 %v17
  %59 = vmatprep.subr.mxu0 0.0
  %60 = vmatpush1.msra.mxu0 %v16
  %61 = vmatprep.subr.mxu0 0.0
  %62 = vmatpush1.msra.mxu0 %v15
  %63 = vmatprep.subr.mxu0 0.0
  %64 = vmatpush2.msra.mxu0 0.0
  %65 = vmatprep.subr.mxu0 0.0
  %66 = vmatpush2.msra.mxu0 0.0
  %67 = vmatprep.subr.mxu0 0.0
  %68 = vmatpush2.msra.mxu0 0.0
  %69 = vmatprep.subr.mxu0 0.0
  %70 = vmatpush2.msra.mxu0 0.0
  %71 = vmatprep.subr.mxu0 0.0
  %72 = vmatpush2.msra.mxu0 0.0
  %73 = vmatprep.subr.mxu0 0.0
  %74 = vmatpush2.msra.mxu0 0.0
  %75 = vmatprep.subr.mxu0 0.0
  %76 = vmatpush2.msra.mxu0 0.0
  %77 = vmatprep.subr.mxu0 0.0
  %78 = vmatpush2.msra.mxu0 0.0
  %79 = vmatprep.subr.mxu0 0.0
  %80 = vmatpush2.msra.mxu0 0.0
  %81 = vmatprep.subr.mxu0 0.0
  %82 = vmatpush2.msra.mxu0 0.0
  %83 = vmatprep.subr.mxu0 0.0
  %84 = vmatpush2.msra.mxu0 0.0
  %85 = vmatprep.subr.mxu0 0.0
  %86 = vmatpush2.msra.mxu0 0.0
  %87 = vmatprep.subr.mxu0 0.0
  %88 = vmatpush2.msra.mxu0 0.0
  %89 = vmatprep.subr.mxu0 0.0
  %90 = vmatpush2.msra.mxu0 0.0
  %91 = vmatprep.subr.mxu0 0.0
  %92 = vmatpush2.msra.mxu0 0.0
  %93 = vmatprep.subr.mxu0 0.0
  %94 = vmatpush2.msra.mxu0 0.0
  %95 = vmatprep.mubr.f32.mxu0 0.0
  %96 = vmatmul.mubr.f32.gmra.mxu0 %v14
  %v97 = vpop.f32.mrf.mxu0
  %v98 = vadd.f32 0.0, %v97
  %v99 = vpop.f32.mrf.mxu0
  %100 = vdwg.mxu0
  %101 = vadd.xlane.f32.xlu0 %v98
  %v102 = vpop.xlane.xlu0 %101
  %v103 = vmul.f32 %v102, 0.0078125
  %v104 = vsub.f32 %v98, %v103
  %v105 = vmul.f32 %v104, %v104
  %106 = vadd.xlane.f32.xlu0 %v105
  %v107 = vpop.xlane.xlu0 %106
  %v108 = vmul.f32 %v107, 0.0078125
  %v109 = vadd.f32 %v108, 1e-05
  %v110 = vrsqrt.pop %v109
  %v111 = vmul.f32 %v104, %v110
  %v112 = vmax.f32 %v111, 0.0
  %v113 = vld [vmem:[%s2] sm:$0xff]
  %vm114 = vcmask 64512
  %v116 = vsel %vm114, %v113, 0
  %118 = vmatprep.subr.mxu0 0.0
  %119 = vmatpush1.msra.mxu0 0.0
  %120 = vmatprep.subr.mxu0 0.0
  %121 = vmatpush1.msra.mxu0 0.0
  %122 = vmatprep.subr.mxu0 0.0
  %123 = vmatpush1.msra.mxu0 0.0
  %124 = vmatprep.subr.mxu0 0.0
  %125 = vmatpush1.msra.mxu0 0.0
  %126 = vmatprep.subr.mxu0 0.0
  %127 = vmatpush1.msra.mxu0 0.0
  %128 = vmatprep.subr.mxu0 0.0
  %129 = vmatpush1.msra.mxu0 0.0
  %130 = vmatprep.subr.mxu0 0.0
  %131 = vmatpush1.msra.mxu0 0.0
  %132 = vmatprep.subr.mxu0 0.0
  %133 = vmatpush1.msra.mxu0 0.0
  %134 = vmatprep.subr.mxu0 0.0
  %135 = vmatpush1.msra.mxu0 0.0
  %136 = vmatprep.subr.mxu0 0.0
  %137 = vmatpush1.msra.mxu0 0.0
  %138 = vmatprep.subr.mxu0 0.0
  %139 = vmatpush1.msra.mxu0 0.0
  %140 = vmatprep.subr.mxu0 0.0
  %141 = vmatpush1.msra.mxu0 0.0
  %142 = vmatprep.subr.mxu0 0.0
  %143 = vmatpush1.msra.mxu0 0.0
  %144 = vmatprep.subr.mxu0 0.0
  %145 = vmatpush1.msra.mxu0 0.0
  %146 = vmatprep.subr.mxu0 0.0
  %147 = vmatpush1.msra.mxu0 0.0
  %148 = vmatprep.subr.mxu0 0.0
  %149 = vmatpush1.msra.mxu0 %v112
  %150 = vmatprep.subr.mxu0 0.0
  %151 = vmatpush2.msra.mxu0 0.0
  %152 = vmatprep.subr.mxu0 0.0
  %153 = vmatpush2.msra.mxu0 0.0
  %154 = vmatprep.subr.mxu0 0.0
  %155 = vmatpush2.msra.mxu0 0.0
  %156 = vmatprep.subr.mxu0 0.0
  %157 = vmatpush2.msra.mxu0 0.0
  %158 = vmatprep.subr.mxu0 0.0
  %159 = vmatpush2.msra.mxu0 0.0
  %160 = vmatprep.subr.mxu0 0.0
  %161 = vmatpush2.msra.mxu0 0.0
  %162 = vmatprep.subr.mxu0 0.0
  %163 = vmatpush2.msra.mxu0 0.0
  %164 = vmatprep.subr.mxu0 0.0
  %165 = vmatpush2.msra.mxu0 0.0
  %166 = vmatprep.subr.mxu0 0.0
  %167 = vmatpush2.msra.mxu0 0.0
  %168 = vmatprep.subr.mxu0 0.0
  %169 = vmatpush2.msra.mxu0 0.0
  %170 = vmatprep.subr.mxu0 0.0
  %171 = vmatpush2.msra.mxu0 0.0
  %172 = vmatprep.subr.mxu0 0.0
  %173 = vmatpush2.msra.mxu0 0.0
  %174 = vmatprep.subr.mxu0 0.0
  %175 = vmatpush2.msra.mxu0 0.0
  %176 = vmatprep.subr.mxu0 0.0
  %177 = vmatpush2.msra.mxu0 0.0
  %178 = vmatprep.subr.mxu0 0.0
  %179 = vmatpush2.msra.mxu0 0.0
  %180 = vmatprep.subr.mxu0 0.0
  %181 = vmatpush2.msra.mxu0 0.0
  %182 = vmatprep.mubr.f32.mxu0 0.0
  %183 = vmatmul.mubr.f32.gmra.mxu0 %v116
  %v184 = vpop.f32.mrf.mxu0
  %v185 = vadd.f32 0.0, %v184
  %v186 = vpop.f32.mrf.mxu0
  %187 = vdwg.mxu0
  %188 = vadd.xlane.f32.xlu0 %v185
  %v189 = vpop.xlane.xlu0 %188
  %v190 = vmul.f32 %v189, 0.0078125
  %v191 = vsub.f32 %v185, %v190
  %v192 = vmul.f32 %v191, %v191
  %193 = vadd.xlane.f32.xlu0 %v192
  %v194 = vpop.xlane.xlu0 %193
  %v195 = vmul.f32 %v194, 0.0078125
  %v196 = vadd.f32 %v195, 1e-05
  %v197 = vrsqrt.pop %v196
  %v198 = vmul.f32 %v191, %v197
  %v199 = vmax.f32 %v198, 0.0
  %200 = vst [vmem:[%s3] sm:$0xff] %v199
  // Predicated region
  $region14: #{center_block_forward.1} parent=0 // pred_check
    _
  $region15: #{center_block_forward.1} parent=0 // pred_check_branch
    %202 = sbr.rel (0) target = $region17
  $region16: #{center_block_forward.1} parent=0 // pred_region
    _
  $region17: #{center_block_forward.1} parent=0 // pred_fallthru
    _
  // Predicated region
  $region18: #{center_block_forward.1} parent=0 // pred_check
    _
  $region19: #{center_block_forward.1} parent=0 // pred_check_branch
    %204 = sbr.rel (0) target = $region21
  $region20: #{center_block_forward.1} parent=0 // pred_region
    _
  $region21: #{center_block_forward.1} parent=0 // pred_fallthru
    _

</llo_original>
